<compile_context>
chip_gen: v7x
topology: tpu7x:2x2x1
jax: 0.10.0
libtpu: 0.0.40
codegen_flags: <defaults>
</compile_context>

<pallas_src>
import functools

import jax
import jax.numpy as jnp
from jax.experimental import pallas as pl
from jax.experimental.pallas import tpu as pltpu


_VMEM_LIMIT_BYTES = 40 * 1024 * 1024   # raise v5e's 16 MiB scoped default; < v7x's 64 MiB physical
_FUSED_VMEM_BUDGET = 24 * 1024 * 1024  # use the fused single-call path only below this footprint


# ---------------------------------------------------------------------------
# Fused single-invocation kernel (small graphs: everything VMEM resident).
# ---------------------------------------------------------------------------
def _gcn_res_fused_kernel(a_ref, xrow_ref, w1_ref, b1_ref, w2_ref, b2_ref,
                          w3_ref, b3_ref, o_ref):
    a = a_ref[...]                                               # (N, N) bf16 adjacency

    # layer1 (in_feats == 1): keep it off the MXU.
    #   A @ x  -> VPU multiply + XLU row-sum           (N, 1)
    #   h @ W1 -> broadcast outer product (VPU)        (N, 64)
    h = jnp.sum(a.astype(jnp.float32) * xrow_ref[...], axis=1, keepdims=True)
    x1 = jnp.maximum(h * w1_ref[...] + b1_ref[...], 0.0)         # f32 (N, 64)

    # layer2: newx = (A @ x1) @ W2 + b2 ; x2 = relu(x1 + newx)
    x1_bf = x1.astype(jnp.bfloat16)                              # bf16 MXU operands
    h2 = jnp.dot(a, x1_bf, preferred_element_type=jnp.float32)
    newx = jnp.dot(h2, w2_ref[...], preferred_element_type=jnp.float32) + b2_ref[...]
    x2 = jnp.maximum(x1 + newx, 0.0)

    # layer3: out = (A @ x2) @ W3 + b3
    h3 = jnp.dot(a, x2.astype(jnp.bfloat16), preferred_element_type=jnp.float32)
    o_ref[...] = (jnp.dot(h3, w3_ref[...], preferred_element_type=jnp.float32)
                  + b3_ref[...]).astype(o_ref.dtype)


def gcn_res_forward_fused(adj_bf16, feat_row, prepared):
    (w1t, b1r), (w2t, b2r), (w3t, b3r) = prepared
    n = adj_bf16.shape[0]
    out_feats = w3t.shape[1]
    vmem = pl.BlockSpec(memory_space=pltpu.MemorySpace.VMEM)
    return pl.pallas_call(
        _gcn_res_fused_kernel,
        out_shape=jax.ShapeDtypeStruct((n, out_feats), jnp.float32),
        in_specs=[vmem] * 8,
        out_specs=vmem,
        compiler_params=pltpu.CompilerParams(vmem_limit_bytes=_VMEM_LIMIT_BYTES),
    )(adj_bf16, feat_row, w1t, b1r, w2t, b2r, w3t, b3r)


# ---------------------------------------------------------------------------
# Row-tiled per-layer path (scales past the fused path's VMEM budget).
# ---------------------------------------------------------------------------
def _gcn_layer1_tiled_kernel(a_ref, xrow_ref, w_ref, b_ref, o_ref):
    # in_feats == 1: A @ x is a weighted row-sum (VPU/XLU), x @ W1 an outer product (VPU).
    h = jnp.sum(a_ref[...].astype(jnp.float32) * xrow_ref[...], axis=1, keepdims=True)
    o_ref[...] = jnp.maximum(h * w_ref[...] + b_ref[...], 0.0).astype(o_ref.dtype)


def _gcn_layer_tiled_kernel(a_ref, x_ref, w_ref, b_ref, o_ref, *,
                            tile_n, apply_relu, add_residual):
    # a_ref: (tile_n, N) bf16 row block ; x_ref: (N, in_f) bf16 full activations.
    h = jnp.dot(a_ref[...], x_ref[...], preferred_element_type=jnp.float32)
    y = jnp.dot(h, w_ref[...], preferred_element_type=jnp.float32) + b_ref[...]
    if add_residual:  # layer2: residual uses this tile's rows of the resident x
        row0 = pl.multiple_of(pl.program_id(0) * tile_n, tile_n)
        y = y + x_ref[pl.ds(row0, tile_n), :].astype(jnp.float32)
    if apply_relu:
        y = jnp.maximum(y, 0.0)
    o_ref[...] = y.astype(o_ref.dtype)


def _tiled_compiler_params():
    return pltpu.CompilerParams(
        dimension_semantics=("parallel",),   # node-row axis: both TCs on v7x; no-op on v5e/v6e
        vmem_limit_bytes=_VMEM_LIMIT_BYTES,
    )


def _gcn_layer1_tiled(adj_bf16, feat_row, w1t, b1r, tile_n):
    n = adj_bf16.shape[0]
    out_f = w1t.shape[1]
    return pl.pallas_call(
        _gcn_layer1_tiled_kernel,
        out_shape=jax.ShapeDtypeStruct((n, out_f), jnp.bfloat16),
        grid_spec=pltpu.PrefetchScalarGridSpec(
            num_scalar_prefetch=0,
            grid=(n // tile_n,),
            in_specs=[
                pl.BlockSpec((tile_n, n), lambda i: (i, 0)),   # A row tile (streamed)
                pl.BlockSpec((1, n), lambda i: (0, 0)),        # features as a lane-dense row
                pl.BlockSpec((1, out_f), lambda i: (0, 0)),
                pl.BlockSpec((1, out_f), lambda i: (0, 0)),
            ],
            out_specs=pl.BlockSpec((tile_n, out_f), lambda i: (i, 0)),
        ),
        compiler_params=_tiled_compiler_params(),
    )(adj_bf16, feat_row, w1t, b1r)


def _gcn_layer_tiled(adj_bf16, x_bf16, wt, br, tile_n, *, apply_relu,
                     add_residual, out_dtype):
    n = adj_bf16.shape[0]
    in_f = x_bf16.shape[1]
    out_f = wt.shape[1]
    kernel = functools.partial(_gcn_layer_tiled_kernel, tile_n=tile_n,
                               apply_relu=apply_relu, add_residual=add_residual)
    return pl.pallas_call(
        kernel,
        out_shape=jax.ShapeDtypeStruct((n, out_f), out_dtype),
        grid_spec=pltpu.PrefetchScalarGridSpec(
            num_scalar_prefetch=0,
            grid=(n // tile_n,),
            in_specs=[
                pl.BlockSpec((tile_n, n), lambda i: (i, 0)),   # A row tile (streamed)
                pl.BlockSpec((n, in_f), lambda i: (0, 0)),     # full activations (resident)
                pl.BlockSpec((in_f, out_f), lambda i: (0, 0)),
                pl.BlockSpec((1, out_f), lambda i: (0, 0)),
            ],
            out_specs=pl.BlockSpec((tile_n, out_f), lambda i: (i, 0)),
        ),
        compiler_params=_tiled_compiler_params(),
    )(adj_bf16, x_bf16, wt, br)


def gcn_res_forward_tiled(adj_bf16, feat_row, prepared, tile_n):
    """Per-layer row-tiled path: x1/x2 are materialized (bf16) in HBM between layers."""
    (w1t, b1r), (w2t, b2r), (w3t, b3r) = prepared
    x1 = _gcn_layer1_tiled(adj_bf16, feat_row, w1t, b1r, tile_n)          # relu'd, bf16
    x2 = _gcn_layer_tiled(adj_bf16, x1, w2t, b2r, tile_n,
                          apply_relu=True, add_residual=True, out_dtype=jnp.bfloat16)
    return _gcn_layer_tiled(adj_bf16, x2, w3t, b3r, tile_n,
                            apply_relu=False, add_residual=False, out_dtype=jnp.float32)


# ---------------------------------------------------------------------------
# Public wrapper + parameter prep.
# ---------------------------------------------------------------------------
def prepare_params(params):
    """One-time glue: nn.Linear (out,in) weights -> (in,out); biases -> (1,out)."""
    return [(jnp.asarray(w, jnp.float32).T, jnp.asarray(b, jnp.float32)[None, :])
            for w, b in params]


def gcn_res_forward(adj, features, prepared, *, tile_n=256):
    """adj: (N, N) dense adjacency; features: (N, 1) node features."""
    n = features.shape[0]
    adj_bf16 = adj.astype(jnp.bfloat16)                 # exact for 0/1 adjacency
    feat_row = features.astype(jnp.float32).reshape(1, n)

    # Fused-path footprint: bf16 A + one f32 A-sized temp (layer1) + activations.
    fused_bytes = n * n * (2 + 4) + 8 * n * 128 * 4
    if fused_bytes <= _FUSED_VMEM_BUDGET:
        return gcn_res_forward_fused(adj_bf16, feat_row, prepared)

    # TODO(synk): pad N (and add a TILE_K reduction axis for the A-matmul) when N
    # is not a multiple of tile_n or a (tile_n, N) A row block no longer fits VMEM.
    assert n % tile_n == 0, "tiled path requires N % tile_n == 0"
    return gcn_res_forward_tiled(adj_bf16, feat_row, prepared, tile_n)


# ---------------------------------------------------------------------------
# Pure-JAX f32 reference (mirrors the PyTorch module, dropout = identity).
# ---------------------------------------------------------------------------
def gcn_res_reference(adj, features, params):
    (w1, b1), (w2, b2), (w3, b3) = params
    a = adj.astype(jnp.float32)
    x1 = jax.nn.relu((a @ features) @ w1.T + b1)
    newx = (a @ x1) @ w2.T + b2
    x2 = jax.nn.relu(x1 + newx)
    return (a @ x2) @ w3.T + b3


def _linear_init(kw, kb, in_f, out_f):
    # Deterministic nn.Linear-style init: U(-1/sqrt(in), 1/sqrt(in))
    bound = 1.0 / (float(in_f) ** 0.5)
    w = jax.random.uniform(kw, (out_f, in_f), minval=-bound, maxval=bound, dtype=jnp.float32)
    b = jax.random.uniform(kb, (out_f,), minval=-bound, maxval=bound, dtype=jnp.float32)
    return w, b


if __name__ == "__main__":
    key = jax.random.PRNGKey(0)
    N = 64  # number of graph nodes
    k_adj, k_feat, kw1, kb1, kw2, kb2, kw3, kb3 = jax.random.split(key, 8)

    # random sparse-ish graph as dense adjacency (row i = in-neighbors of i)
    adj = (jax.random.uniform(k_adj, (N, N)) < 0.2).astype(jnp.float32)
    features = jax.random.normal(k_feat, (N, 1), dtype=jnp.float32)

    params = [
        _linear_init(kw1, kb1, 1, 64),    # layer1: GCNLayer(1, 64)
        _linear_init(kw2, kb2, 64, 64),   # layer2: GCNLayer(64, 64)
        _linear_init(kw3, kb3, 64, 128),  # layer3: GCNLayer(64, 128)
    ]
    prepared = prepare_params(params)     # one-time (in,out) weights / (1,out) biases

    ref = gcn_res_reference(adj, features, params)

    # Main path: at N=64 the dispatcher picks the fused single-invocation kernel.
    out = gcn_res_forward(adj, features, prepared)
    jax.block_until_ready(out)
    assert out.shape == (N, 128) and out.dtype == jnp.float32

    # Also exercise the scalable row-tiled path (grid of 2 row blocks at tile_n=32).
    adj_bf16 = adj.astype(jnp.bfloat16)
    feat_row = features.astype(jnp.float32).reshape(1, N)
    out_tiled = gcn_res_forward_tiled(adj_bf16, feat_row, prepared, tile_n=32)
    jax.block_until_ready(out_tiled)
    assert out_tiled.shape == (N, 128) and out_tiled.dtype == jnp.float32

    # Loose tolerance: activations feeding the A-matmuls are bf16 by design.
    scale = float(jnp.max(jnp.abs(ref)))
    err_fused = float(jnp.max(jnp.abs(out - ref)))
    err_tiled = float(jnp.max(jnp.abs(out_tiled - ref)))
    assert err_fused <= 0.05 * scale + 1e-3, ("fused mismatch", err_fused, scale)
    assert err_tiled <= 0.05 * scale + 1e-3, ("tiled mismatch", err_tiled, scale)

    print("KERNEL_OK")
</pallas_src>

<mosaic_0001>
module attributes {stable_mosaic.version = 11 : i64} {
  func.func @_gcn_res_fused_kernel(%arg0: memref<64x64xbf16, #tpu.memory_space<vmem>>, %arg1: memref<1x64xf32, #tpu.memory_space<vmem>>, %arg2: memref<1x64xf32, #tpu.memory_space<vmem>>, %arg3: memref<1x64xf32, #tpu.memory_space<vmem>>, %arg4: memref<64x64xf32, #tpu.memory_space<vmem>>, %arg5: memref<1x64xf32, #tpu.memory_space<vmem>>, %arg6: memref<64x128xf32, #tpu.memory_space<vmem>>, %arg7: memref<1x128xf32, #tpu.memory_space<vmem>>, %arg8: memref<64x128xf32, #tpu.memory_space<vmem>>) attributes {dimension_semantics = [], scalar_prefetch = 0 : i64, scratch_operands = 0 : i64, tpu.core_type = #tpu.core_type<tc>} {
    %c0 = arith.constant 0 : index
    %c0_0 = arith.constant 0 : index
    %0 = vector.load %arg0[%c0, %c0_0] : memref<64x64xbf16, #tpu.memory_space<vmem>>, vector<64x64xbf16>
    %1 = arith.extf %0 : vector<64x64xbf16> to vector<64x64xf32>
    %c0_1 = arith.constant 0 : index
    %c0_2 = arith.constant 0 : index
    %2 = vector.load %arg1[%c0_1, %c0_2] : memref<1x64xf32, #tpu.memory_space<vmem>>, vector<1x64xf32>
    %3 = vector.broadcast %2 : vector<1x64xf32> to vector<64x64xf32>
    %4 = arith.mulf %1, %3 : vector<64x64xf32>
    %cst = arith.constant dense<0.000000e+00> : vector<64xf32>
    %5 = vector.multi_reduction <add>, %4, %cst [1] : vector<64x64xf32> to vector<64xf32>
    %6 = vector.shape_cast %5 : vector<64xf32> to vector<64x1xf32>
    %c0_3 = arith.constant 0 : index
    %c0_4 = arith.constant 0 : index
    %7 = vector.load %arg2[%c0_3, %c0_4] : memref<1x64xf32, #tpu.memory_space<vmem>>, vector<1x64xf32>
    %8 = vector.broadcast %6 : vector<64x1xf32> to vector<64x64xf32>
    %9 = vector.broadcast %7 : vector<1x64xf32> to vector<64x64xf32>
    %10 = arith.mulf %8, %9 : vector<64x64xf32>
    %c0_5 = arith.constant 0 : index
    %c0_6 = arith.constant 0 : index
    %11 = vector.load %arg3[%c0_5, %c0_6] : memref<1x64xf32, #tpu.memory_space<vmem>>, vector<1x64xf32>
    %12 = vector.broadcast %11 : vector<1x64xf32> to vector<64x64xf32>
    %13 = arith.addf %10, %12 : vector<64x64xf32>
    %cst_7 = arith.constant 0.000000e+00 : f32
    %14 = vector.broadcast %cst_7 : f32 to vector<64x64xf32>
    %15 = arith.maximumf %13, %14 : vector<64x64xf32>
    %16 = arith.truncf %15 : vector<64x64xf32> to vector<64x64xbf16>
    %cst_8 = arith.constant dense<0.000000e+00> : vector<64x64xf32>
    %17 = tpu.matmul %0, %16, %cst_8 {dimension_numbers = #tpu.dot_dimension_numbers<[1], [0], [0], [1], [0, 0, 1, 1], [], []>} : vector<64x64xbf16>, vector<64x64xbf16>, vector<64x64xf32> -> vector<64x64xf32>
    %c0_9 = arith.constant 0 : index
    %c0_10 = arith.constant 0 : index
    %18 = vector.load %arg4[%c0_9, %c0_10] : memref<64x64xf32, #tpu.memory_space<vmem>>, vector<64x64xf32>
    %cst_11 = arith.constant dense<0.000000e+00> : vector<64x64xf32>
    %19 = tpu.matmul %17, %18, %cst_11 {dimension_numbers = #tpu.dot_dimension_numbers<[1], [0], [0], [1], [0, 0, 1, 1], [], []>} : vector<64x64xf32>, vector<64x64xf32>, vector<64x64xf32> -> vector<64x64xf32>
    %c0_12 = arith.constant 0 : index
    %c0_13 = arith.constant 0 : index
    %20 = vector.load %arg5[%c0_12, %c0_13] : memref<1x64xf32, #tpu.memory_space<vmem>>, vector<1x64xf32>
    %21 = vector.broadcast %20 : vector<1x64xf32> to vector<64x64xf32>
    %22 = arith.addf %19, %21 : vector<64x64xf32>
    %23 = arith.addf %15, %22 : vector<64x64xf32>
    %cst_14 = arith.constant 0.000000e+00 : f32
    %24 = vector.broadcast %cst_14 : f32 to vector<64x64xf32>
    %25 = arith.maximumf %23, %24 : vector<64x64xf32>
    %26 = arith.truncf %25 : vector<64x64xf32> to vector<64x64xbf16>
    %cst_15 = arith.constant dense<0.000000e+00> : vector<64x64xf32>
    %27 = tpu.matmul %0, %26, %cst_15 {dimension_numbers = #tpu.dot_dimension_numbers<[1], [0], [0], [1], [0, 0, 1, 1], [], []>} : vector<64x64xbf16>, vector<64x64xbf16>, vector<64x64xf32> -> vector<64x64xf32>
    %c0_16 = arith.constant 0 : index
    %c0_17 = arith.constant 0 : index
    %28 = vector.load %arg6[%c0_16, %c0_17] : memref<64x128xf32, #tpu.memory_space<vmem>>, vector<64x128xf32>
    %cst_18 = arith.constant dense<0.000000e+00> : vector<64x128xf32>
    %29 = tpu.matmul %27, %28, %cst_18 {dimension_numbers = #tpu.dot_dimension_numbers<[1], [0], [0], [1], [0, 0, 1, 1], [], []>} : vector<64x64xf32>, vector<64x128xf32>, vector<64x128xf32> -> vector<64x128xf32>
    %c0_19 = arith.constant 0 : index
    %c0_20 = arith.constant 0 : index
    %30 = vector.load %arg7[%c0_19, %c0_20] : memref<1x128xf32, #tpu.memory_space<vmem>>, vector<1x128xf32>
    %31 = vector.broadcast %30 : vector<1x128xf32> to vector<64x128xf32>
    %32 = arith.addf %29, %31 : vector<64x128xf32>
    %c0_21 = arith.constant 0 : index
    %c0_22 = arith.constant 0 : index
    %33 = vector.load %arg8[%c0_21, %c0_22] : memref<64x128xf32, #tpu.memory_space<vmem>>, vector<64x128xf32>
    tpu.vector_store %arg8[%c0_21, %c0_22], %32 {strides = array<i32>} : memref<64x128xf32, #tpu.memory_space<vmem>>, vector<64x128xf32>,
    return
  }
}

</mosaic_0001>

<llo_original>
// kernel: tpu_custom_call.1
$region0: #{tpu_custom_call.1}
  #allocation0 [shape = 'u32[]', space=smem, size = 0x4, offset = 0x4, fixed_abs, tag = 'smem constant byte address 0x4 - core index']
  #allocation1 [shape = 'u32[144,128]{1,0:T(1,128)}', space=vmem, size = 0x12000, scoped, tag = 'internal scratch']
  %s0 = inlined_call_operand.hbm [shape: bf16[64,64], index: 0, kind: input, shape index: {}]
  %s1 = inlined_call_operand.vmem [shape: f32[1,64], index: 1, kind: input, shape index: {}]
  %s2 = inlined_call_operand.vmem [shape: f32[1,64], index: 2, kind: input, shape index: {}]
  %s3 = inlined_call_operand.vmem [shape: f32[1,64], index: 3, kind: input, shape index: {}]
  %s4 = inlined_call_operand.hbm [shape: f32[64,64], index: 4, kind: input, shape index: {}]
  %s5 = inlined_call_operand.vmem [shape: f32[1,64], index: 5, kind: input, shape index: {}]
  %s6 = inlined_call_operand.hbm [shape: f32[64,128], index: 6, kind: input, shape index: {}]
  %s7 = inlined_call_operand.vmem [shape: f32[1,128], index: 7, kind: input, shape index: {}]
  %s8 = inlined_call_operand.hbm [shape: f32[64,128], index: 8, kind: output, shape index: {}]
  %s9 = sld [smem:[#allocation0]]
  $region54: #{tpu_custom_call.1} parent=0
    _
  %s11 = ssub.s32 1, %s9
  %s12 = scalar_select 0, %s11, %s9
  $region1: #{tpu_custom_call.1} parent=0
    #allocation2 [shape = 'u8[16384]{0}', space=vmem, size = 0x4000, scoped, tag = 'input window, operand 0, single buffered']
    #allocation3 [shape = 's32[1]{0}', space=sflag, size = 0x4, scoped, tag = 'scoped memory for tpu_custom_call.1']
    #allocation4 [shape = 's32[1]{0}', space=sflag, size = 0x4, scoped, tag = 'scoped memory for tpu_custom_call.1']
    #allocation5 [shape = 'u8[32768]{0}', space=vmem, size = 0x8000, scoped, tag = 'input window, operand 4, single buffered']
    #allocation6 [shape = 's32[1]{0}', space=sflag, size = 0x4, scoped, tag = 'scoped memory for tpu_custom_call.1']
    #allocation7 [shape = 'u8[32768]{0}', space=vmem, size = 0x8000, scoped, tag = 'input window, operand 6, single buffered']
    #allocation8 [shape = 'u8[32768]{0}', space=vmem, size = 0x8000, scoped, tag = 'output window, operand 0, single buffered']
    %13 = vsyncpa [#allocation3], 0
    %14 = vsyncpa [#allocation6], 0
    %15 = vsyncpa [#allocation4], 0
    // Predicated region
    $region2: #{tpu_custom_call.1} parent=1 // pred_check
      _
    $region3: #{tpu_custom_call.1} parent=1 // pred_check_branch
      %17 = sbr.rel (0) target = $region5
    $region4: #{tpu_custom_call.1} parent=1 // pred_region
      %s19 = ssub.s32 512, 512
      %20 = vsyncadd [#allocation3], %s19
      %s21 = sshll.u32 [#allocation2], 4
      %s22 = int_to_ptr.vmem [resolvable:$true] %s21
      %27 = dma.hbm_to_vmem [thread:$0]  %s0, 512, %s22, [#allocation3], 64, 64, 4
    $region5: #{tpu_custom_call.1} parent=1 // pred_fallthru
      _
    // Predicated region
    $region6: #{tpu_custom_call.1} parent=1 // pred_check
      _
    $region7: #{tpu_custom_call.1} parent=1 // pred_check_branch
      %29 = sbr.rel (0) target = $region9
    $region8: #{tpu_custom_call.1} parent=1 // pred_region
      _
    $region9: #{tpu_custom_call.1} parent=1 // pred_fallthru
      _
    // Predicated region
    $region10: #{tpu_custom_call.1} parent=1 // pred_check
      _
    $region11: #{tpu_custom_call.1} parent=1 // pred_check_branch
      %31 = sbr.rel (0) target = $region13
    $region12: #{tpu_custom_call.1} parent=1 // pred_region
      _
    $region13: #{tpu_custom_call.1} parent=1 // pred_fallthru
      _
    // Predicated region
    $region14: #{tpu_custom_call.1} parent=1 // pred_check
      _
    $region15: #{tpu_custom_call.1} parent=1 // pred_check_branch
      %33 = sbr.rel (0) target = $region17
    $region16: #{tpu_custom_call.1} parent=1 // pred_region
      _
    $region17: #{tpu_custom_call.1} parent=1 // pred_fallthru
      _
    // Predicated region
    $region18: #{tpu_custom_call.1} parent=1 // pred_check
      _
    $region19: #{tpu_custom_call.1} parent=1 // pred_check_branch
      %35 = sbr.rel (0) target = $region21
    $region20: #{tpu_custom_call.1} parent=1 // pred_region
      %s37 = ssub.s32 1024, 1024
      %38 = vsyncadd [#allocation6], %s37
      %s39 = sshll.u32 [#allocation5], 4
      %s40 = int_to_ptr.vmem [resolvable:$true] %s39
      %45 = dma.hbm_to_vmem [thread:$0]  %s4, 1024, %s40, [#allocation6], 128, 128, 8
    $region21: #{tpu_custom_call.1} parent=1 // pred_fallthru
      _
    // Predicated region
    $region22: #{tpu_custom_call.1} parent=1 // pred_check
      _
    $region23: #{tpu_custom_call.1} parent=1 // pred_check_branch
      %47 = sbr.rel (0) target = $region25
    $region24: #{tpu_custom_call.1} parent=1 // pred_region
      _
    $region25: #{tpu_custom_call.1} parent=1 // pred_fallthru
      _
    // Predicated region
    $region26: #{tpu_custom_call.1} parent=1 // pred_check
      _
    $region27: #{tpu_custom_call.1} parent=1 // pred_check_branch
      %49 = sbr.rel (0) target = $region29
    $region28: #{tpu_custom_call.1} parent=1 // pred_region
      %s51 = ssub.s32 1024, 1024
      %52 = vsyncadd [#allocation6], %s51
      %s53 = sshll.u32 [#allocation7], 4
      %s54 = int_to_ptr.vmem [resolvable:$true] %s53
      %59 = dma.hbm_to_vmem [thread:$0]  %s6, 1024, %s54, [#allocation6], 128, 128, 8
    $region29: #{tpu_custom_call.1} parent=1 // pred_fallthru
      _
    // Predicated region
    $region30: #{tpu_custom_call.1} parent=1 // pred_check
      _
    $region31: #{tpu_custom_call.1} parent=1 // pred_check_branch
      %61 = sbr.rel (0) target = $region33
    $region32: #{tpu_custom_call.1} parent=1 // pred_region
      _
    $region33: #{tpu_custom_call.1} parent=1 // pred_fallthru
      _
    // Predicated region
    $region34: #{tpu_custom_call.1} parent=1 // pred_check
      _
    $region35: #{tpu_custom_call.1} parent=1 // pred_check_branch
      %63 = sbr.rel (0) target = $region37
    $region36: #{tpu_custom_call.1} parent=1 // pred_region
      %64 = dma.done [#allocation3], 512
    $region37: #{tpu_custom_call.1} parent=1 // pred_fallthru
      _
    // Predicated region
    $region38: #{tpu_custom_call.1} parent=1 // pred_check
      _
    $region39: #{tpu_custom_call.1} parent=1 // pred_check_branch
      %66 = sbr.rel (0) target = $region41
    $region40: #{tpu_custom_call.1} parent=1 // pred_region
      %67 = dma.done [#allocation6], 1024
    $region41: #{tpu_custom_call.1} parent=1 // pred_fallthru
      _
    // Predicated region
    $region42: #{tpu_custom_call.1} parent=1 // pred_check
      _
    $region43: #{tpu_custom_call.1} parent=1 // pred_check_branch
      %69 = sbr.rel (0) target = $region45
    $region44: #{tpu_custom_call.1} parent=1 // pred_region
      %70 = dma.done [#allocation6], 1024
    $region45: #{tpu_custom_call.1} parent=1 // pred_fallthru
      _
    %v72 = vld [vmem:[#allocation2] sm:$0xf]
    %v73 = vld [vmem:[#allocation2 + $0x4] sm:$0xf]
    %v74 = vld [vmem:[#allocation2 + $0x8] sm:$0xf]
    %v75 = vld [vmem:[#allocation2 + $0xc] sm:$0xf]
    %v76 = vld [vmem:[#allocation2 + $0x10] sm:$0xf]
    %v77 = vld [vmem:[#allocation2 + $0x14] sm:$0xf]
    %v78 = vld [vmem:[#allocation2 + $0x18] sm:$0xf]
    %v79 = vld [vmem:[#allocation2 + $0x1c] sm:$0xf]
    %v80 = vunpack.c.l.bf16 %v72
    %v81 = vunpack.c.l.bf16 %v73
    %v82 = vunpack.c.l.bf16 %v74
    %v83 = vunpack.c.l.bf16 %v75
    %v84 = vunpack.c.l.bf16 %v76
    %v85 = vunpack.c.l.bf16 %v77
    %v86 = vunpack.c.l.bf16 %v78
    %v87 = vunpack.c.l.bf16 %v79
    %v88 = vld [vmem:[%s1] sm:$0x1]
    %v90 = vlaneseq
    %v91 = vshrl.u32 %v90, 7
    %v92 = vsub.s32 0, %v91
    %v93 = vrot.slane %v88, %v92
    %v95 = vmul.f32 %v80, %v93
    %v96 = vmul.f32 %v81, %v93
    %v97 = vmul.f32 %v82, %v93
    %v98 = vmul.f32 %v83, %v93
    %v99 = vmul.f32 %v84, %v93
    %v100 = vmul.f32 %v85, %v93
    %v101 = vmul.f32 %v86, %v93
    %v102 = vmul.f32 %v87, %v93
    %vm103 = vcmask 523264
    %v104 = vsel %vm103, %v95, 0.0
    %105 = vadd.xlane.f32.xlu0 %v104
    %v106 = vpop.xlane.xlu0 %105
    %v107 = vsel %vm103, %v96, 0.0
    %108 = vadd.xlane.f32.xlu0 %v107
    %v109 = vpop.xlane.xlu0 %108
    %v110 = vsel %vm103, %v97, 0.0
    %111 = vadd.xlane.f32.xlu0 %v110
    %v112 = vpop.xlane.xlu0 %111
    %v113 = vsel %vm103, %v98, 0.0
    %114 = vadd.xlane.f32.xlu0 %v113
    %v115 = vpop.xlane.xlu0 %114
    %v116 = vsel %vm103, %v99, 0.0
    %117 = vadd.xlane.f32.xlu0 %v116
    %v118 = vpop.xlane.xlu0 %117
    %v119 = vsel %vm103, %v100, 0.0
    %120 = vadd.xlane.f32.xlu0 %v119
    %v121 = vpop.xlane.xlu0 %120
    %v122 = vsel %vm103, %v101, 0.0
    %123 = vadd.xlane.f32.xlu0 %v122
    %v124 = vpop.xlane.xlu0 %123
    %v125 = vsel %vm103, %v102, 0.0
    %126 = vadd.xlane.f32.xlu0 %v125
    %v127 = vpop.xlane.xlu0 %126
    %v128 = vld [vmem:[%s2] sm:$0x1]
    %v130 = vlaneseq
    %v131 = vshrl.u32 %v130, 7
    %v132 = vsub.s32 0, %v131
    %v133 = vrot.slane %v128, %v132
    %v135 = vmul.f32 %v106, %v133
    %v136 = vmul.f32 %v109, %v133
    %v137 = vmul.f32 %v112, %v133
    %v138 = vmul.f32 %v115, %v133
    %v139 = vmul.f32 %v118, %v133
    %v140 = vmul.f32 %v121, %v133
    %v141 = vmul.f32 %v124, %v133
    %v142 = vmul.f32 %v127, %v133
    %v143 = vld [vmem:[%s3] sm:$0x1]
    %v145 = vlaneseq
    %v146 = vshrl.u32 %v145, 7
    %v147 = vsub.s32 0, %v146
    %v148 = vrot.slane %v143, %v147
    %v150 = vadd.f32 %v135, %v148
    %v151 = vadd.f32 %v136, %v148
    %v152 = vadd.f32 %v137, %v148
    %v153 = vadd.f32 %v138, %v148
    %v154 = vadd.f32 %v139, %v148
    %v155 = vadd.f32 %v140, %v148
    %v156 = vadd.f32 %v141, %v148
    %v157 = vadd.f32 %v142, %v148
    %v158 = vmax.f32 %v150, 0.0
    %v159 = vmax.f32 %v151, 0.0
    %v160 = vmax.f32 %v152, 0.0
    %v161 = vmax.f32 %v153, 0.0
    %v162 = vmax.f32 %v154, 0.0
    %v163 = vmax.f32 %v155, 0.0
    %v164 = vmax.f32 %v156, 0.0
    %v165 = vmax.f32 %v157, 0.0
    %v166 = vpack.c.bf16 %v159, %v158
    %v167 = vpack.c.bf16 %v161, %v160
    %v168 = vpack.c.bf16 %v163, %v162
    %v169 = vpack.c.bf16 %v165, %v164
    %v178 = vunpack.c.l.b16 %v72
    %v179 = vunpack.c.l.b16 %v73
    %v180 = vunpack.c.l.b16 %v74
    %v181 = vunpack.c.l.b16 %v75
    %v182 = vunpack.c.l.b16 %v76
    %v183 = vunpack.c.l.b16 %v77
    %v184 = vunpack.c.l.b16 %v78
    %v185 = vunpack.c.l.b16 %v79
    %v186 = vpack.c.b16 %v179, %v178
    %v187 = vpack.c.b16 %v181, %v180
    %v188 = vpack.c.b16 %v183, %v182
    %v189 = vpack.c.b16 %v185, %v184
    %v191 = vsel %vm103, %v186, 0
    %v194 = vsel %vm103, %v187, 0
    %v197 = vsel %vm103, %v188, 0
    %v200 = vsel %vm103, %v189, 0
    %202 = vmatprep.subr.bf16.mxu0 0
    %203 = vmatpush1.bf16.msra.mxu0 %v166
    %204 = vmatprep.subr.bf16.mxu0 0
    %205 = vmatpush1.bf16.msra.mxu0 %v167
    %206 = vmatprep.subr.bf16.mxu0 0
    %207 = vmatpush1.bf16.msra.mxu0 %v168
    %208 = vmatprep.subr.bf16.mxu0 0
    %209 = vmatpush1.bf16.msra.mxu0 %v169
    %210 = vmatprep.subr.bf16.mxu0 0
    %211 = vmatpush1.bf16.msra.mxu0 0
    %212 = vmatprep.subr.bf16.mxu0 0
    %213 = vmatpush1.bf16.msra.mxu0 0
    %214 = vmatprep.subr.bf16.mxu0 0
    %215 = vmatpush1.bf16.msra.mxu0 0
    %216 = vmatprep.subr.bf16.mxu0 0
    %217 = vmatpush1.bf16.msra.mxu0 0
    %218 = vmatprep.subr.bf16.mxu0 0
    %219 = vmatpush1.bf16.msra.mxu0 0
    %220 = vmatprep.subr.bf16.mxu0 0
    %221 = vmatpush1.bf16.msra.mxu0 0
    %222 = vmatprep.subr.bf16.mxu0 0
    %223 = vmatpush1.bf16.msra.mxu0 0
    %224 = vmatprep.subr.bf16.mxu0 0
    %225 = vmatpush1.bf16.msra.mxu0 0
    %226 = vmatprep.subr.bf16.mxu0 0
    %227 = vmatpush1.bf16.msra.mxu0 0
    %228 = vmatprep.subr.bf16.mxu0 0
    %229 = vmatpush1.bf16.msra.mxu0 0
    %230 = vmatprep.subr.bf16.mxu0 0
    %231 = vmatpush1.bf16.msra.mxu0 0
    %232 = vmatprep.subr.bf16.mxu0 0
    %233 = vmatpush1.bf16.msra.mxu0 0
    %234 = vmatprep.mubr.bf16.mxu0 0
    %235 = vmatmul.mubr.bf16.gmra.mrb[0].mxu0 %v191
    %v236 = vpop.f32.mrb[0].mxu0
    %v237 = vadd.f32 0.0, %v236
    %v238 = vpop.f32.mrb[0].mxu0
    %v239 = vpop.f32.mrb[0].mxu0
    %v240 = vadd.f32 0.0, %v239
    %v241 = vpop.f32.mrb[0].mxu0
    %242 = vmatprep.mubr.bf16.mxu0 0
    %243 = vmatmul.mubr.bf16.gmra.mrb[0].mxu0 %v194
    %v244 = vpop.f32.mrb[0].mxu0
    %v245 = vadd.f32 0.0, %v244
    %v246 = vpop.f32.mrb[0].mxu0
    %v247 = vpop.f32.mrb[0].mxu0
    %v248 = vadd.f32 0.0, %v247
    %v249 = vpop.f32.mrb[0].mxu0
    %250 = vmatprep.mubr.bf16.mxu0 0
    %251 = vmatmul.mubr.bf16.gmra.mrb[0].mxu0 %v197
    %v252 = vpop.f32.mrb[0].mxu0
    %v253 = vadd.f32 0.0, %v252
    %v254 = vpop.f32.mrb[0].mxu0
    %v255 = vpop.f32.mrb[0].mxu0
    %v256 = vadd.f32 0.0, %v255
    %v257 = vpop.f32.mrb[0].mxu0
    %258 = vmatprep.mubr.bf16.mxu0 0
    %259 = vmatmul.mubr.bf16.gmra.mrb[0].mxu0 %v200
    %v260 = vpop.f32.mrb[0].mxu0
    %v261 = vadd.f32 0.0, %v260
    %v262 = vpop.f32.mrb[0].mxu0
    %v263 = vpop.f32.mrb[0].mxu0
    %v264 = vadd.f32 0.0, %v263
    %v265 = vpop.f32.mrb[0].mxu0
    %266 = vdwg.mxu0
    %v267 = vld [vmem:[#allocation5] sm:$0xff]
    %v268 = vld [vmem:[#allocation5 + $0x8] sm:$0xff]
    %v269 = vld [vmem:[#allocation5 + $0x10] sm:$0xff]
    %v270 = vld [vmem:[#allocation5 + $0x18] sm:$0xff]
    %v271 = vld [vmem:[#allocation5 + $0x20] sm:$0xff]
    %v272 = vld [vmem:[#allocation5 + $0x28] sm:$0xff]
    %v273 = vld [vmem:[#allocation5 + $0x30] sm:$0xff]
    %v274 = vld [vmem:[#allocation5 + $0x38] sm:$0xff]
    %v275 = vld [vmem:[%s5] sm:$0x1]
    %v277 = vlaneseq
    %v278 = vshrl.u32 %v277, 7
    %v279 = vsub.s32 0, %v278
    %v280 = vrot.slane %v275, %v279
    %v283 = vsel %vm103, %v237, 0
    %v286 = vsel %vm103, %v240, 0
    %v289 = vsel %vm103, %v245, 0
    %v292 = vsel %vm103, %v248, 0
    %v295 = vsel %vm103, %v253, 0
    %v298 = vsel %vm103, %v256, 0
    %v301 = vsel %vm103, %v261, 0
    %v304 = vsel %vm103, %v264, 0
    %306 = vmatprep.subr.mxu0 0.0
    %307 = vmatpush1.msra.mxu0 %v267
    %308 = vmatprep.subr.mxu0 0.0
    %309 = vmatpush1.msra.mxu0 %v268
    %310 = vmatprep.subr.mxu0 0.0
    %311 = vmatpush1.msra.mxu0 %v269
    %312 = vmatprep.subr.mxu0 0.0
    %313 = vmatpush1.msra.mxu0 %v270
    %314 = vmatprep.subr.mxu0 0.0
    %315 = vmatpush1.msra.mxu0 %v271
    %316 = vmatprep.subr.mxu0 0.0
    %317 = vmatpush1.msra.mxu0 %v272
    %318 = vmatprep.subr.mxu0 0.0
    %319 = vmatpush1.msra.mxu0 %v273
    %320 = vmatprep.subr.mxu0 0.0
    %321 = vmatpush1.msra.mxu0 %v274
    %322 = vmatprep.subr.mxu0 0.0
    %323 = vmatpush1.msra.mxu0 0.0
    %324 = vmatprep.subr.mxu0 0.0
    %325 = vmatpush1.msra.mxu0 0.0
    %326 = vmatprep.subr.mxu0 0.0
    %327 = vmatpush1.msra.mxu0 0.0
    %328 = vmatprep.subr.mxu0 0.0
    %329 = vmatpush1.msra.mxu0 0.0
    %330 = vmatprep.subr.mxu0 0.0
    %331 = vmatpush1.msra.mxu0 0.0
    %332 = vmatprep.subr.mxu0 0.0
    %333 = vmatpush1.msra.mxu0 0.0
    %334 = vmatprep.subr.mxu0 0.0
    %335 = vmatpush1.msra.mxu0 0.0
    %336 = vmatprep.subr.mxu0 0.0
    %337 = vmatpush1.msra.mxu0 0.0
    %338 = vmatprep.subr.mxu0 0.0
    %339 = vmatpush1.msra.mxu0 0.0
    %340 = vmatprep.subr.mxu0 0.0
    %341 = vmatpush1.msra.mxu0 0.0
    %342 = vmatprep.subr.mxu0 0.0
    %343 = vmatpush1.msra.mxu0 0.0
    %344 = vmatprep.subr.mxu0 0.0
    %345 = vmatpush1.msra.mxu0 0.0
    %346 = vmatprep.subr.mxu0 0.0
    %347 = vmatpush1.msra.mxu0 0.0
    %348 = vmatprep.subr.mxu0 0.0
    %349 = vmatpush1.msra.mxu0 0.0
    %350 = vmatprep.subr.mxu0 0.0
    %351 = vmatpush1.msra.mxu0 0.0
    %352 = vmatprep.subr.mxu0 0.0
    %353 = vmatpush1.msra.mxu0 0.0
    %354 = vmatprep.subr.mxu0 0.0
    %355 = vmatpush1.msra.mxu0 0.0
    %356 = vmatprep.subr.mxu0 0.0
    %357 = vmatpush1.msra.mxu0 0.0
    %358 = vmatprep.subr.mxu0 0.0
    %359 = vmatpush1.msra.mxu0 0.0
    %360 = vmatprep.subr.mxu0 0.0
    %361 = vmatpush1.msra.mxu0 0.0
    %362 = vmatprep.subr.mxu0 0.0
    %363 = vmatpush1.msra.mxu0 0.0
    %364 = vmatprep.subr.mxu0 0.0
    %365 = vmatpush1.msra.mxu0 0.0
    %366 = vmatprep.subr.mxu0 0.0
    %367 = vmatpush1.msra.mxu0 0.0
    %368 = vmatprep.subr.mxu0 0.0
    %369 = vmatpush1.msra.mxu0 0.0
    %370 = vmatprep.mubr.f32.mxu0 0.0
    %371 = vmatmul.mubr.f32.gmra.mrb[0].mxu0 %v283
    %v372 = vpop.f32.mrb[0].mxu0
    %v373 = vadd.f32 %v280, %v372
    %v374 = vpop.f32.mrb[0].mxu0
    %375 = vmatprep.mubr.f32.mxu0 0.0
    %376 = vmatmul.mubr.f32.gmra.mrb[0].mxu0 %v286
    %v377 = vpop.f32.mrb[0].mxu0
    %v378 = vadd.f32 %v280, %v377
    %v379 = vpop.f32.mrb[0].mxu0
    %380 = vmatprep.mubr.f32.mxu0 0.0
    %381 = vmatmul.mubr.f32.gmra.mrb[0].mxu0 %v289
    %v382 = vpop.f32.mrb[0].mxu0
    %v383 = vadd.f32 %v280, %v382
    %v384 = vpop.f32.mrb[0].mxu0
    %385 = vmatprep.mubr.f32.mxu0 0.0
    %386 = vmatmul.mubr.f32.gmra.mrb[0].mxu0 %v292
    %v387 = vpop.f32.mrb[0].mxu0
    %v388 = vadd.f32 %v280, %v387
    %v389 = vpop.f32.mrb[0].mxu0
    %390 = vmatprep.mubr.f32.mxu0 0.0
    %391 = vmatmul.mubr.f32.gmra.mrb[0].mxu0 %v295
    %v392 = vpop.f32.mrb[0].mxu0
    %v393 = vadd.f32 %v280, %v392
    %v394 = vpop.f32.mrb[0].mxu0
    %395 = vmatprep.mubr.f32.mxu0 0.0
    %396 = vmatmul.mubr.f32.gmra.mrb[0].mxu0 %v298
    %v397 = vpop.f32.mrb[0].mxu0
    %v398 = vadd.f32 %v280, %v397
    %v399 = vpop.f32.mrb[0].mxu0
    %400 = vmatprep.mubr.f32.mxu0 0.0
    %401 = vmatmul.mubr.f32.gmra.mrb[0].mxu0 %v301
    %v402 = vpop.f32.mrb[0].mxu0
    %v403 = vadd.f32 %v280, %v402
    %v404 = vpop.f32.mrb[0].mxu0
    %405 = vmatprep.mubr.f32.mxu0 0.0
    %406 = vmatmul.mubr.f32.gmra.mrb[0].mxu0 %v304
    %v407 = vpop.f32.mrb[0].mxu0
    %v408 = vadd.f32 %v280, %v407
    %v409 = vpop.f32.mrb[0].mxu0
    %410 = vdwg.mxu0
    %v411 = vadd.f32 %v158, %v373
    %v412 = vadd.f32 %v159, %v378
    %v413 = vadd.f32 %v160, %v383
    %v414 = vadd.f32 %v161, %v388
    %v415 = vadd.f32 %v162, %v393
    %v416 = vadd.f32 %v163, %v398
    %v417 = vadd.f32 %v164, %v403
    %v418 = vadd.f32 %v165, %v408
    %v419 = vmax.f32 %v411, 0.0
    %v420 = vmax.f32 %v412, 0.0
    %v421 = vmax.f32 %v413, 0.0
    %v422 = vmax.f32 %v414, 0.0
    %v423 = vmax.f32 %v415, 0.0
    %v424 = vmax.f32 %v416, 0.0
    %v425 = vmax.f32 %v417, 0.0
    %v426 = vmax.f32 %v418, 0.0
    %v427 = vpack.c.bf16 %v420, %v419
    %v428 = vpack.c.bf16 %v422, %v421
    %v429 = vpack.c.bf16 %v424, %v423
    %v430 = vpack.c.bf16 %v426, %v425
    %431 = vmatprep.subr.bf16.mxu0 0
    %432 = vmatpush1.bf16.msra.mxu0 %v427
    %433 = vmatprep.subr.bf16.mxu0 0
    %434 = vmatpush1.bf16.msra.mxu0 %v428
    %435 = vmatprep.subr.bf16.mxu0 0
    %436 = vmatpush1.bf16.msra.mxu0 %v429
    %437 = vmatprep.subr.bf16.mxu0 0
    %438 = vmatpush1.bf16.msra.mxu0 %v430
    %439 = vmatprep.subr.bf16.mxu0 0
    %440 = vmatpush1.bf16.msra.mxu0 0
    %441 = vmatprep.subr.bf16.mxu0 0
    %442 = vmatpush1.bf16.msra.mxu0 0
    %443 = vmatprep.subr.bf16.mxu0 0
    %444 = vmatpush1.bf16.msra.mxu0 0
    %445 = vmatprep.subr.bf16.mxu0 0
    %446 = vmatpush1.bf16.msra.mxu0 0
    %447 = vmatprep.subr.bf16.mxu0 0
    %448 = vmatpush1.bf16.msra.mxu0 0
    %449 = vmatprep.subr.bf16.mxu0 0
    %450 = vmatpush1.bf16.msra.mxu0 0
    %451 = vmatprep.subr.bf16.mxu0 0
    %452 = vmatpush1.bf16.msra.mxu0 0
    %453 = vmatprep.subr.bf16.mxu0 0
    %454 = vmatpush1.bf16.msra.mxu0 0
    %455 = vmatprep.subr.bf16.mxu0 0
    %456 = vmatpush1.bf16.msra.mxu0 0
    %457 = vmatprep.subr.bf16.mxu0 0
    %458 = vmatpush1.bf16.msra.mxu0 0
    %459 = vmatprep.subr.bf16.mxu0 0
    %460 = vmatpush1.bf16.msra.mxu0 0
    %461 = vmatprep.subr.bf16.mxu0 0
    %462 = vmatpush1.bf16.msra.mxu0 0
    %463 = vmatprep.mubr.bf16.mxu0 0
    %464 = vmatmul.mubr.bf16.gmra.mrb[0].mxu0 %v191
    %v465 = vpop.f32.mrb[0].mxu0
    %v466 = vadd.f32 0.0, %v465
    %v467 = vpop.f32.mrb[0].mxu0
    %v468 = vpop.f32.mrb[0].mxu0
    %v469 = vadd.f32 0.0, %v468
    %v470 = vpop.f32.mrb[0].mxu0
    %471 = vmatprep.mubr.bf16.mxu0 0
    %472 = vmatmul.mubr.bf16.gmra.mrb[0].mxu0 %v194
    %v473 = vpop.f32.mrb[0].mxu0
    %v474 = vadd.f32 0.0, %v473
    %v475 = vpop.f32.mrb[0].mxu0
    %v476 = vpop.f32.mrb[0].mxu0
    %v477 = vadd.f32 0.0, %v476
    %v478 = vpop.f32.mrb[0].mxu0
    %479 = vmatprep.mubr.bf16.mxu0 0
    %480 = vmatmul.mubr.bf16.gmra.mrb[0].mxu0 %v197
    %v481 = vpop.f32.mrb[0].mxu0
    %v482 = vadd.f32 0.0, %v481
    %v483 = vpop.f32.mrb[0].mxu0
    %v484 = vpop.f32.mrb[0].mxu0
    %v485 = vadd.f32 0.0, %v484
    %v486 = vpop.f32.mrb[0].mxu0
    %487 = vmatprep.mubr.bf16.mxu0 0
    %488 = vmatmul.mubr.bf16.gmra.mrb[0].mxu0 %v200
    %v489 = vpop.f32.mrb[0].mxu0
    %v490 = vadd.f32 0.0, %v489
    %v491 = vpop.f32.mrb[0].mxu0
    %v492 = vpop.f32.mrb[0].mxu0
    %v493 = vadd.f32 0.0, %v492
    %v494 = vpop.f32.mrb[0].mxu0
    %495 = vdwg.mxu0
    %v496 = vld [vmem:[#allocation7] sm:$0xff]
    %v497 = vld [vmem:[#allocation7 + $0x8] sm:$0xff]
    %v498 = vld [vmem:[#allocation7 + $0x10] sm:$0xff]
    %v499 = vld [vmem:[#allocation7 + $0x18] sm:$0xff]
    %v500 = vld [vmem:[#allocation7 + $0x20] sm:$0xff]
    %v501 = vld [vmem:[#allocation7 + $0x28] sm:$0xff]
    %v502 = vld [vmem:[#allocation7 + $0x30] sm:$0xff]
    %v503 = vld [vmem:[#allocation7 + $0x38] sm:$0xff]
    %v504 = vld [vmem:[%s7] sm:$0x1]
    %v506 = vlaneseq
    %v507 = vshrl.u32 %v506, 7
    %v508 = vsub.s32 0, %v507
    %v509 = vrot.slane %v504, %v508
    %v512 = vsel %vm103, %v466, 0
    %v515 = vsel %vm103, %v469, 0
    %v518 = vsel %vm103, %v474, 0
    %v521 = vsel %vm103, %v477, 0
    %v524 = vsel %vm103, %v482, 0
    %v527 = vsel %vm103, %v485, 0
    %v530 = vsel %vm103, %v490, 0
    %v533 = vsel %vm103, %v493, 0
    %535 = vmatprep.subr.mxu0 0.0
    %536 = vmatpush1.msra.mxu0 %v496
    %537 = vmatprep.subr.mxu0 0.0
    %538 = vmatpush1.msra.mxu0 %v497
    %539 = vmatprep.subr.mxu0 0.0
    %540 = vmatpush1.msra.mxu0 %v498
    %541 = vmatprep.subr.mxu0 0.0
    %542 = vmatpush1.msra.mxu0 %v499
    %543 = vmatprep.subr.mxu0 0.0
    %544 = vmatpush1.msra.mxu0 %v500
    %545 = vmatprep.subr.mxu0 0.0
    %546 = vmatpush1.msra.mxu0 %v501
    %547 = vmatprep.subr.mxu0 0.0
    %548 = vmatpush1.msra.mxu0 %v502
    %549 = vmatprep.subr.mxu0 0.0
    %550 = vmatpush1.msra.mxu0 %v503
    %551 = vmatprep.subr.mxu0 0.0
    %552 = vmatpush1.msra.mxu0 0.0
    %553 = vmatprep.subr.mxu0 0.0
    %554 = vmatpush1.msra.mxu0 0.0
    %555 = vmatprep.subr.mxu0 0.0
    %556 = vmatpush1.msra.mxu0 0.0
    %557 = vmatprep.subr.mxu0 0.0
    %558 = vmatpush1.msra.mxu0 0.0
    %559 = vmatprep.subr.mxu0 0.0
    %560 = vmatpush1.msra.mxu0 0.0
    %561 = vmatprep.subr.mxu0 0.0
    %562 = vmatpush1.msra.mxu0 0.0
    %563 = vmatprep.subr.mxu0 0.0
    %564 = vmatpush1.msra.mxu0 0.0
    %565 = vmatprep.subr.mxu0 0.0
    %566 = vmatpush1.msra.mxu0 0.0
    %567 = vmatprep.subr.mxu0 0.0
    %568 = vmatpush1.msra.mxu0 0.0
    %569 = vmatprep.subr.mxu0 0.0
    %570 = vmatpush1.msra.mxu0 0.0
    %571 = vmatprep.subr.mxu0 0.0
    %572 = vmatpush1.msra.mxu0 0.0
    %573 = vmatprep.subr.mxu0 0.0
    %574 = vmatpush1.msra.mxu0 0.0
    %575 = vmatprep.subr.mxu0 0.0
    %576 = vmatpush1.msra.mxu0 0.0
    %577 = vmatprep.subr.mxu0 0.0
    %578 = vmatpush1.msra.mxu0 0.0
    %579 = vmatprep.subr.mxu0 0.0
    %580 = vmatpush1.msra.mxu0 0.0
    %581 = vmatprep.subr.mxu0 0.0
    %582 = vmatpush1.msra.mxu0 0.0
    %583 = vmatprep.subr.mxu0 0.0
    %584 = vmatpush1.msra.mxu0 0.0
    %585 = vmatprep.subr.mxu0 0.0
    %586 = vmatpush1.msra.mxu0 0.0
    %587 = vmatprep.subr.mxu0 0.0
    %588 = vmatpush1.msra.mxu0 0.0
    %589 = vmatprep.subr.mxu0 0.0
    %590 = vmatpush1.msra.mxu0 0.0
    %591 = vmatprep.subr.mxu0 0.0
    %592 = vmatpush1.msra.mxu0 0.0
    %593 = vmatprep.subr.mxu0 0.0
    %594 = vmatpush1.msra.mxu0 0.0
    %595 = vmatprep.subr.mxu0 0.0
    %596 = vmatpush1.msra.mxu0 0.0
    %597 = vmatprep.subr.mxu0 0.0
    %598 = vmatpush1.msra.mxu0 0.0
    %599 = vmatprep.mubr.f32.mxu0 0.0
    %600 = vmatmul.mubr.f32.gmra.mrb[0].mxu0 %v512
    %v601 = vpop.f32.mrb[0].mxu0
    %v602 = vadd.f32 %v509, %v601
    %v603 = vpop.f32.mrb[0].mxu0
    %604 = vmatprep.mubr.f32.mxu0 0.0
    %605 = vmatmul.mubr.f32.gmra.mrb[0].mxu0 %v515
    %v606 = vpop.f32.mrb[0].mxu0
    %v607 = vadd.f32 %v509, %v606
    %v608 = vpop.f32.mrb[0].mxu0
    %609 = vmatprep.mubr.f32.mxu0 0.0
    %610 = vmatmul.mubr.f32.gmra.mrb[0].mxu0 %v518
    %v611 = vpop.f32.mrb[0].mxu0
    %v612 = vadd.f32 %v509, %v611
    %v613 = vpop.f32.mrb[0].mxu0
    %614 = vmatprep.mubr.f32.mxu0 0.0
    %615 = vmatmul.mubr.f32.gmra.mrb[0].mxu0 %v521
    %v616 = vpop.f32.mrb[0].mxu0
    %v617 = vadd.f32 %v509, %v616
    %v618 = vpop.f32.mrb[0].mxu0
    %619 = vmatprep.mubr.f32.mxu0 0.0
    %620 = vmatmul.mubr.f32.gmra.mrb[0].mxu0 %v524
    %v621 = vpop.f32.mrb[0].mxu0
    %v622 = vadd.f32 %v509, %v621
    %v623 = vpop.f32.mrb[0].mxu0
    %624 = vmatprep.mubr.f32.mxu0 0.0
    %625 = vmatmul.mubr.f32.gmra.mrb[0].mxu0 %v527
    %v626 = vpop.f32.mrb[0].mxu0
    %v627 = vadd.f32 %v509, %v626
    %v628 = vpop.f32.mrb[0].mxu0
    %629 = vmatprep.mubr.f32.mxu0 0.0
    %630 = vmatmul.mubr.f32.gmra.mrb[0].mxu0 %v530
    %v631 = vpop.f32.mrb[0].mxu0
    %v632 = vadd.f32 %v509, %v631
    %v633 = vpop.f32.mrb[0].mxu0
    %634 = vmatprep.mubr.f32.mxu0 0.0
    %635 = vmatmul.mubr.f32.gmra.mrb[0].mxu0 %v533
    %v636 = vpop.f32.mrb[0].mxu0
    %v637 = vadd.f32 %v509, %v636
    %v638 = vpop.f32.mrb[0].mxu0
    %639 = vdwg.mxu0
    %640 = vst [vmem:[#allocation8] sm:$0xff] %v602
    %641 = vst [vmem:[#allocation8 + $0x8] sm:$0xff] %v607
    %642 = vst [vmem:[#allocation8 + $0x10] sm:$0xff] %v612
    %643 = vst [vmem:[#allocation8 + $0x18] sm:$0xff] %v617
    %644 = vst [vmem:[#allocation8 + $0x20] sm:$0xff] %v622
    %645 = vst [vmem:[#allocation8 + $0x28] sm:$0xff] %v627
    %646 = vst [vmem:[#allocation8 + $0x30] sm:$0xff] %v632
    %647 = vst [vmem:[#allocation8 + $0x38] sm:$0xff] %v637
    // Predicated region
    $region46: #{tpu_custom_call.1} parent=1 // pred_check
      _
    $region47: #{tpu_custom_call.1} parent=1 // pred_check_branch
      %649 = sbr.rel (0) target = $region49
    $region48: #{tpu_custom_call.1} parent=1 // pred_region
      %s651 = ssub.s32 1024, 1024
      %652 = vsyncadd [#allocation4], %s651
      %s653 = sshll.u32 [#allocation8], 4
      %s654 = int_to_ptr.vmem [resolvable:$true] %s653
      %659 = dma.vmem_to_hbm [thread:$0]  %s654, 1024, %s8, [#allocation4], 128, 128, 8
    $region49: #{tpu_custom_call.1} parent=1 // pred_fallthru
      _
    // Predicated region
    $region50: #{tpu_custom_call.1} parent=1 // pred_check
      _
    $region51: #{tpu_custom_call.1} parent=1 // pred_check_branch
      %661 = sbr.rel (0) target = $region53
    $region52: #{tpu_custom_call.1} parent=1 // pred_region
      %662 = dma.done [#allocation4], 1024
    $region53: #{tpu_custom_call.1} parent=1 // pred_fallthru
      _
    %663 = vsyncpa [#allocation3], 1
    %664 = vsyncpa [#allocation6], 1
    %665 = vsyncpa [#allocation4], 1

</llo_original>
